<compile_context>
chip_gen: v6e
topology: v6e:2x2x1
jax: 0.10.0
libtpu: 0.0.40
codegen_flags: <defaults>
</compile_context>

<pallas_src>
import jax
import jax.numpy as jnp
from jax.experimental import pallas as pl
from jax.experimental.pallas import tpu as pltpu

IN_FEATURES = 1024  # fixed by the module: nn.Linear(1024, 2 * nz)


def _round_up(x, m):
    return (x + m - 1) // m * m


def _pick_tile_b(B):
    """Batch tile: big tiles for HBM-roofline, but >=2 grid steps for v7x."""
    if B <= 512:
        return B  # single tile; launch overhead dominates at small B anyway
    return int(min(1024, max(512, _round_up(pl.cdiv(B, 2), 8))))


def _ga_kernel(x_ref, w1_ref, w2_ref, b1_ref, b2_ref, eps_ref, slab_ref):
    """slab = y1 + exp(y2 / 2) * (eps @ P).

    Column layout (prepared once in prepare_ga_params), OUT = round_up(3*nz,128):
        y1 = x @ W1 + b1 = ( mu | logvar | mu     | 0 )
        y2 = x @ W2 + b2 = ( 0  | 0      | logvar | 0 )
    P places eps at the latent columns [2*nz, 3*nz), so
        slab = ( mu | logvar | mu + exp(logvar/2)*eps | 0 ) = (mu|logvar|latent|pad)
    i.e. one lane-dense, 128-multiple store; no cross-lane realignment and no
    masked sub-128-lane stores.
    """
    nz = eps_ref.shape[1]
    out_w = slab_ref.shape[1]

    # bf16 MXU operands (no-op cast when the producer already emits bf16 x),
    # f32 accumulation, f32 epilogue.
    x = x_ref[...].astype(jnp.bfloat16)
    y1 = jnp.dot(x, w1_ref[...], preferred_element_type=jnp.float32) + b1_ref[...]
    y2 = jnp.dot(x, w2_ref[...], preferred_element_type=jnp.float32) + b2_ref[...]

    # Place eps at the latent columns via a tiny exact 0/1 f32 matmul
    # (placement-by-weights: MXU slack is free in this HBM-bound kernel).
    row = jax.lax.broadcasted_iota(jnp.int32, (nz, out_w), 0)
    col = jax.lax.broadcasted_iota(jnp.int32, (nz, out_w), 1)
    place = (col == row + 2 * nz).astype(jnp.float32)            # [nz, OUT]
    eps_placed = jnp.dot(eps_ref[...], place,
                         preferred_element_type=jnp.float32)      # [TB, OUT]

    # For valid rows: outside the latent lanes y2 == 0 and eps_placed == 0, so
    # pad lanes come out as exact 0 (finite-safe).  Undefined rows of a ragged
    # last tile are dropped by Pallas on writeback.
    slab_ref[...] = y1 + jnp.exp(y2 * 0.5) * eps_placed


def prepare_ga_params(weight, bias):
    """ONE-TIME parameter prep (init time, not per call).

    weight: PyTorch layout [2*nz, 1024]; bias: [2*nz].
    Returns bf16 weights / f32 biases padded to OUT = round_up(3*nz, 128):
        w1/b1 columns: ( W_mu | W_logvar | W_mu     | 0 )
        w2/b2 columns: ( 0    | 0        | W_logvar | 0 )
    so the kernel can assemble (mu | logvar | latent | pad) with no cross-lane
    data movement.
    """
    w = jnp.asarray(weight, jnp.float32)          # [2*nz, 1024]
    b = jnp.asarray(bias, jnp.float32)            # [2*nz]
    two_nz, in_f = w.shape
    nz = two_nz // 2
    out_w = max(128, _round_up(3 * nz, 128))
    pad = out_w - 3 * nz

    w_t = w.T                                     # [1024, 2*nz]
    w_mu, w_lv = w_t[:, :nz], w_t[:, nz:]
    zcol = jnp.zeros((in_f, pad), jnp.float32)
    w1 = jnp.concatenate([w_mu, w_lv, w_mu, zcol], axis=1).astype(jnp.bfloat16)
    w2 = jnp.concatenate([jnp.zeros((in_f, 2 * nz), jnp.float32), w_lv, zcol],
                         axis=1).astype(jnp.bfloat16)

    b_mu, b_lv = b[:nz], b[nz:]
    zrow = jnp.zeros((pad,), jnp.float32)
    b1 = jnp.concatenate([b_mu, b_lv, b_mu, zrow]).reshape(1, out_w)
    b2 = jnp.concatenate([jnp.zeros((2 * nz,), jnp.float32), b_lv, zrow]
                         ).reshape(1, out_w)
    return w1, w2, b1, b2


def ga_forward(x, w1, w2, b1, b2, eps):
    """x: [B, 1024] (bf16 preferred, f32 ok); w1/w2: [1024, OUT] bf16;
    b1/b2: [1, OUT] f32; eps: [B, nz] f32.  Returns (mu, logvar, latent)."""
    B = x.shape[0]
    out_w = w1.shape[1]
    nz = eps.shape[1]

    tile_b = _pick_tile_b(B)
    grid = (pl.cdiv(B, tile_b),)

    bytes_accessed = (
        B * IN_FEATURES * x.dtype.itemsize        # x  (dominant stream)
        + 2 * IN_FEATURES * out_w * 2             # w1 + w2 (bf16, grid-resident)
        + 2 * out_w * 4                           # b1 + b2
        + B * nz * eps.dtype.itemsize             # eps
        + B * out_w * 4                           # slab writeback
    )
    cost = pl.CostEstimate(
        flops=2 * B * out_w * (2 * IN_FEATURES + nz),
        transcendentals=B * out_w,
        bytes_accessed=bytes_accessed,
    )

    slab = pl.pallas_call(
        _ga_kernel,
        out_shape=jax.ShapeDtypeStruct((B, out_w), jnp.float32),
        grid_spec=pltpu.PrefetchScalarGridSpec(
            num_scalar_prefetch=0,
            grid=grid,
            in_specs=[
                pl.BlockSpec((tile_b, IN_FEATURES), lambda i: (i, 0)),  # x tile
                pl.BlockSpec((IN_FEATURES, out_w), lambda i: (0, 0)),   # W1 resident
                pl.BlockSpec((IN_FEATURES, out_w), lambda i: (0, 0)),   # W2 resident
                pl.BlockSpec((1, out_w), lambda i: (0, 0)),             # b1 resident
                pl.BlockSpec((1, out_w), lambda i: (0, 0)),             # b2 resident
                pl.BlockSpec((tile_b, nz), lambda i: (i, 0)),           # eps tile
            ],
            out_specs=pl.BlockSpec((tile_b, out_w), lambda i: (i, 0)),
        ),
        compiler_params=pltpu.CompilerParams(
            # Batch axis is independent -> megacore sharding on v7x (2 TCs).
            dimension_semantics=("parallel",),
        ),
        cost_estimate=cost,
    )(x, w1, w2, b1, b2, eps)

    # Wrapper-side split of the lane-dense slab (layout plumbing, not compute).
    mu = slab[:, :nz]
    logvar = slab[:, nz:2 * nz]
    latent = slab[:, 2 * nz:3 * nz]
    return mu, logvar, latent


if __name__ == "__main__":
    # Small, module-consistent shapes: batch=8, num_latent=32, in_features=1024.
    B = 8
    NZ = 32

    key = jax.random.PRNGKey(0)
    k_x, k_w, k_eps = jax.random.split(key, 3)

    # Deterministic parameter init mirroring initialize_weights():
    #   Linear weight ~ N(0, 0.02), bias = 0.
    weight = 0.02 * jax.random.normal(k_w, (2 * NZ, IN_FEATURES), dtype=jnp.float32)
    bias = jnp.zeros((2 * NZ,), dtype=jnp.float32)

    # Producer emits bf16 activations (x dominates HBM traffic for this kernel).
    x = jax.random.normal(k_x, (B, IN_FEATURES), dtype=jnp.float32).astype(jnp.bfloat16)
    eps = jax.random.normal(k_eps, (B, NZ), dtype=jnp.float32)

    # One-time init-path prep (transpose + bf16 cast + column padding hoisted).
    params = prepare_ga_params(weight, bias)

    mu, logvar, latent = jax.jit(ga_forward)(x, *params, eps)
    jax.block_until_ready((mu, logvar, latent))

    # Reference in plain JAX, using the same bf16 operand rounding as the kernel.
    w_t = jnp.asarray(weight, jnp.float32).T.astype(jnp.bfloat16)
    y_ref = jnp.dot(x.astype(jnp.bfloat16), w_t,
                    preferred_element_type=jnp.float32) + bias
    mu_ref = y_ref[:, :NZ]
    logvar_ref = y_ref[:, NZ:]
    latent_ref = mu_ref + jnp.exp(logvar_ref * 0.5) * eps

    assert jnp.allclose(mu, mu_ref, atol=2e-3, rtol=2e-3), "mu mismatch"
    assert jnp.allclose(logvar, logvar_ref, atol=2e-3, rtol=2e-3), "logvar mismatch"
    assert jnp.allclose(latent, latent_ref, atol=2e-3, rtol=2e-3), "latent mismatch"

    print("KERNEL_OK")
</pallas_src>

<mosaic_0001>
module attributes {stable_mosaic.version = 11 : i64} {
  func.func @_ga_kernel(%arg0: i32, %arg1: memref<8x1024xbf16, #tpu.memory_space<vmem>>, %arg2: memref<1024x128xbf16, #tpu.memory_space<vmem>>, %arg3: memref<1024x128xbf16, #tpu.memory_space<vmem>>, %arg4: memref<1x128xf32, #tpu.memory_space<vmem>>, %arg5: memref<1x128xf32, #tpu.memory_space<vmem>>, %arg6: memref<8x32xf32, #tpu.memory_space<vmem>>, %arg7: memref<8x128xf32, #tpu.memory_space<vmem>>) attributes {dimension_semantics = [#tpu.dimension_semantics<parallel>], iteration_bounds = array<i64: 1>, scalar_prefetch = 0 : i64, scratch_operands = 0 : i64, tpu.core_type = #tpu.core_type<tc>, window_params = [{transform_indices = @transform_0, window_bounds = array<i64: 8, 1024>}, {pipeline_mode = #tpu.pipeline_mode<synchronous>, transform_indices = @transform_1, window_bounds = array<i64: 1024, 128>}, {pipeline_mode = #tpu.pipeline_mode<synchronous>, transform_indices = @transform_2, window_bounds = array<i64: 1024, 128>}, {pipeline_mode = #tpu.pipeline_mode<synchronous>, transform_indices = @transform_3, window_bounds = array<i64: 1, 128>}, {pipeline_mode = #tpu.pipeline_mode<synchronous>, transform_indices = @transform_4, window_bounds = array<i64: 1, 128>}, {transform_indices = @transform_5, window_bounds = array<i64: 8, 32>}, {transform_indices = @transform_6, window_bounds = array<i64: 8, 128>}]} {
    %c0 = arith.constant 0 : index
    %c0_0 = arith.constant 0 : index
    %0 = vector.load %arg1[%c0, %c0_0] : memref<8x1024xbf16, #tpu.memory_space<vmem>>, vector<8x1024xbf16>
    %c0_1 = arith.constant 0 : index
    %c0_2 = arith.constant 0 : index
    %1 = vector.load %arg2[%c0_1, %c0_2] : memref<1024x128xbf16, #tpu.memory_space<vmem>>, vector<1024x128xbf16>
    %cst = arith.constant dense<0.000000e+00> : vector<8x128xf32>
    %2 = tpu.matmul %0, %1, %cst {dimension_numbers = #tpu.dot_dimension_numbers<[1], [0], [0], [1], [0, 0, 1, 1], [], []>} : vector<8x1024xbf16>, vector<1024x128xbf16>, vector<8x128xf32> -> vector<8x128xf32>
    %c0_3 = arith.constant 0 : index
    %c0_4 = arith.constant 0 : index
    %3 = vector.load %arg4[%c0_3, %c0_4] : memref<1x128xf32, #tpu.memory_space<vmem>>, vector<1x128xf32>
    %4 = vector.broadcast %3 : vector<1x128xf32> to vector<8x128xf32>
    %5 = arith.addf %2, %4 : vector<8x128xf32>
    %c0_5 = arith.constant 0 : index
    %c0_6 = arith.constant 0 : index
    %6 = vector.load %arg3[%c0_5, %c0_6] : memref<1024x128xbf16, #tpu.memory_space<vmem>>, vector<1024x128xbf16>
    %cst_7 = arith.constant dense<0.000000e+00> : vector<8x128xf32>
    %7 = tpu.matmul %0, %6, %cst_7 {dimension_numbers = #tpu.dot_dimension_numbers<[1], [0], [0], [1], [0, 0, 1, 1], [], []>} : vector<8x1024xbf16>, vector<1024x128xbf16>, vector<8x128xf32> -> vector<8x128xf32>
    %c0_8 = arith.constant 0 : index
    %c0_9 = arith.constant 0 : index
    %8 = vector.load %arg5[%c0_8, %c0_9] : memref<1x128xf32, #tpu.memory_space<vmem>>, vector<1x128xf32>
    %9 = vector.broadcast %8 : vector<1x128xf32> to vector<8x128xf32>
    %10 = arith.addf %7, %9 : vector<8x128xf32>
    %11 = tpu.iota {dimensions = array<i32: 0>} : vector<32x128xi32>
    %12 = tpu.iota {dimensions = array<i32: 1>} : vector<32x128xi32>
    %c64_i32 = arith.constant 64 : i32
    %13 = vector.broadcast %c64_i32 : i32 to vector<32x128xi32>
    %14 = arith.addi %11, %13 : vector<32x128xi32>
    %15 = arith.cmpi eq, %12, %14 : vector<32x128xi32>
    %16 = arith.extui %15 : vector<32x128xi1> to vector<32x128xi32>
    %17 = arith.sitofp %16 : vector<32x128xi32> to vector<32x128xf32>
    %c0_10 = arith.constant 0 : index
    %c0_11 = arith.constant 0 : index
    %18 = vector.load %arg6[%c0_10, %c0_11] : memref<8x32xf32, #tpu.memory_space<vmem>>, vector<8x32xf32>
    %cst_12 = arith.constant dense<0.000000e+00> : vector<8x128xf32>
    %19 = tpu.matmul %18, %17, %cst_12 {dimension_numbers = #tpu.dot_dimension_numbers<[1], [0], [0], [1], [0, 0, 1, 1], [], []>} : vector<8x32xf32>, vector<32x128xf32>, vector<8x128xf32> -> vector<8x128xf32>
    %cst_13 = arith.constant 5.000000e-01 : f32
    %20 = vector.broadcast %cst_13 : f32 to vector<8x128xf32>
    %21 = arith.mulf %10, %20 : vector<8x128xf32>
    %22 = math.exp %21 : vector<8x128xf32>
    %23 = arith.mulf %22, %19 : vector<8x128xf32>
    %24 = arith.addf %5, %23 : vector<8x128xf32>
    %c0_14 = arith.constant 0 : index
    %c0_15 = arith.constant 0 : index
    %25 = vector.load %arg7[%c0_14, %c0_15] : memref<8x128xf32, #tpu.memory_space<vmem>>, vector<8x128xf32>
    tpu.vector_store %arg7[%c0_14, %c0_15], %24 {strides = array<i32>} : memref<8x128xf32, #tpu.memory_space<vmem>>, vector<8x128xf32>,
    return
  }
  func.func @transform_0(%arg0: i32) -> (i32, i32) {
    %c0_i32 = arith.constant 0 : i32
    %c0_i32_0 = arith.constant 0 : i32
    return %arg0, %c0_i32 : i32, i32
  }
  func.func @transform_1(%arg0: i32) -> (i32, i32) {
    %c0_i32 = arith.constant 0 : i32
    %c0_i32_0 = arith.constant 0 : i32
    %c0_i32_1 = arith.constant 0 : i32
    return %c0_i32, %c0_i32_0 : i32, i32
  }
  func.func @transform_2(%arg0: i32) -> (i32, i32) {
    %c0_i32 = arith.constant 0 : i32
    %c0_i32_0 = arith.constant 0 : i32
    %c0_i32_1 = arith.constant 0 : i32
    return %c0_i32, %c0_i32_0 : i32, i32
  }
  func.func @transform_3(%arg0: i32) -> (i32, i32) {
    %c0_i32 = arith.constant 0 : i32
    %c0_i32_0 = arith.constant 0 : i32
    %c0_i32_1 = arith.constant 0 : i32
    return %c0_i32, %c0_i32_0 : i32, i32
  }
  func.func @transform_4(%arg0: i32) -> (i32, i32) {
    %c0_i32 = arith.constant 0 : i32
    %c0_i32_0 = arith.constant 0 : i32
    %c0_i32_1 = arith.constant 0 : i32
    return %c0_i32, %c0_i32_0 : i32, i32
  }
  func.func @transform_5(%arg0: i32) -> (i32, i32) {
    %c0_i32 = arith.constant 0 : i32
    %c0_i32_0 = arith.constant 0 : i32
    return %arg0, %c0_i32 : i32, i32
  }
  func.func @transform_6(%arg0: i32) -> (i32, i32) {
    %c0_i32 = arith.constant 0 : i32
    %c0_i32_0 = arith.constant 0 : i32
    return %arg0, %c0_i32 : i32, i32
  }
}

</mosaic_0001>

<llo_original>
// kernel: ga_forward.1
$region0: #{ga_forward.1}
  #allocation0 [shape = 'u32[]', space=smem, size = 0x4, offset = 0x4, fixed_abs, tag = 'smem constant byte address 0x4 - core index']
  #allocation1 [shape = 'u32[144,128]{1,0:T(1,128)}', space=vmem, size = 0x12000, scoped, tag = 'internal scratch']
  %s0 = inlined_call_operand.hbm [shape: bf16[8,1024], index: 0, kind: input, shape index: {}]
  %s1 = inlined_call_operand.hbm [shape: bf16[1024,128], index: 1, kind: input, shape index: {}]
  %s2 = inlined_call_operand.hbm [shape: bf16[1024,128], index: 2, kind: input, shape index: {}]
  %s3 = inlined_call_operand.vmem [shape: f32[1,128], index: 3, kind: input, shape index: {}]
  %s4 = inlined_call_operand.hbm [shape: f32[1,128], index: 4, kind: input, shape index: {}]
  %s5 = inlined_call_operand.vmem [shape: f32[8,32], index: 5, kind: input, shape index: {}]
  %s6 = inlined_call_operand.vmem [shape: f32[8,128], index: 6, kind: output, shape index: {}]
  %s7 = sld [smem:[#allocation0]]
  $region50: #{ga_forward.1} parent=0
    _
  %s9 = ssub.s32 1, %s7
  %s10 = scalar_select 0, %s9, %s7
  $region1: #{ga_forward.1} parent=0
    #allocation2 [shape = 'u8[16384]{0}', space=vmem, size = 0x4000, scoped, tag = 'input window, operand 0, single buffered']
    #allocation3 [shape = 's32[1]{0}', space=sflag, size = 0x4, scoped, tag = 'scoped memory for ga_forward.1']
    #allocation4 [shape = 'u8[262144]{0}', space=vmem, size = 0x40000, scoped, tag = 'input window, operand 1, single buffered']
    #allocation5 [shape = 's32[1]{0}', space=sflag, size = 0x4, scoped, tag = 'scoped memory for ga_forward.1']
    #allocation6 [shape = 'u8[262144]{0}', space=vmem, size = 0x40000, scoped, tag = 'input window, operand 2, single buffered']
    #allocation7 [shape = 'u8[512]{0}', space=vmem, size = 0x400, scoped, tag = 'input window, operand 4, single buffered']
    #allocation8 [shape = 's32[1]{0}', space=sflag, size = 0x4, scoped, tag = 'scoped memory for ga_forward.1']
    %11 = vsyncpa [#allocation3], 0
    %12 = vsyncpa [#allocation5], 0
    %13 = vsyncpa [#allocation8], 0
    // Predicated region
    $region2: #{ga_forward.1} parent=1 // pred_check
      _
    $region3: #{ga_forward.1} parent=1 // pred_check_branch
      %15 = sbr.rel (0) target = $region5
    $region4: #{ga_forward.1} parent=1 // pred_region
      %s17 = ssub.s32 512, 512
      %18 = vsyncadd [#allocation3], %s17
      %s20 = sshll.u32 [#allocation2], 4
      %s21 = int_to_ptr.vmem [resolvable:$true] %s20
      %23 = dma.hbm_to_vmem [thread:$0]  %s0, 512, %s21, [#allocation3]
    $region5: #{ga_forward.1} parent=1 // pred_fallthru
      _
    // Predicated region
    $region6: #{ga_forward.1} parent=1 // pred_check
      _
    $region7: #{ga_forward.1} parent=1 // pred_check_branch
      %25 = sbr.rel (0) target = $region9
    $region8: #{ga_forward.1} parent=1 // pred_region
      %s27 = ssub.s32 8192, 8192
      %28 = vsyncadd [#allocation5], %s27
      %s29 = sshll.u32 [#allocation4], 4
      %s30 = int_to_ptr.vmem [resolvable:$true] %s29
      %35 = dma.hbm_to_vmem [thread:$0]  %s1, 8192, %s30, [#allocation5], 64, 64, 4
    $region9: #{ga_forward.1} parent=1 // pred_fallthru
      _
    // Predicated region
    $region10: #{ga_forward.1} parent=1 // pred_check
      _
    $region11: #{ga_forward.1} parent=1 // pred_check_branch
      %37 = sbr.rel (0) target = $region13
    $region12: #{ga_forward.1} parent=1 // pred_region
      %s39 = ssub.s32 8192, 8192
      %40 = vsyncadd [#allocation5], %s39
      %s41 = sshll.u32 [#allocation6], 4
      %s42 = int_to_ptr.vmem [resolvable:$true] %s41
      %47 = dma.hbm_to_vmem [thread:$0]  %s2, 8192, %s42, [#allocation5], 64, 64, 4
    $region13: #{ga_forward.1} parent=1 // pred_fallthru
      _
    // Predicated region
    $region14: #{ga_forward.1} parent=1 // pred_check
      _
    $region15: #{ga_forward.1} parent=1 // pred_check_branch
      %49 = sbr.rel (0) target = $region17
    $region16: #{ga_forward.1} parent=1 // pred_region
      _
    $region17: #{ga_forward.1} parent=1 // pred_fallthru
      _
    // Predicated region
    $region18: #{ga_forward.1} parent=1 // pred_check
      _
    $region19: #{ga_forward.1} parent=1 // pred_check_branch
      %51 = sbr.rel (0) target = $region21
    $region20: #{ga_forward.1} parent=1 // pred_region
      %s53 = ssub.s32 16, 16
      %54 = vsyncadd [#allocation8], %s53
      %s56 = sshll.u32 [#allocation7], 4
      %s57 = int_to_ptr.vmem [resolvable:$true] %s56
      %59 = dma.hbm_to_vmem [thread:$0]  %s4, 16, %s57, [#allocation8]
    $region21: #{ga_forward.1} parent=1 // pred_fallthru
      _
    // Predicated region
    $region22: #{ga_forward.1} parent=1 // pred_check
      _
    $region23: #{ga_forward.1} parent=1 // pred_check_branch
      %61 = sbr.rel (0) target = $region25
    $region24: #{ga_forward.1} parent=1 // pred_region
      _
    $region25: #{ga_forward.1} parent=1 // pred_fallthru
      _
    // Predicated region
    $region26: #{ga_forward.1} parent=1 // pred_check
      _
    $region27: #{ga_forward.1} parent=1 // pred_check_branch
      %63 = sbr.rel (0) target = $region29
    $region28: #{ga_forward.1} parent=1 // pred_region
      %64 = dma.done [#allocation3], 512
    $region29: #{ga_forward.1} parent=1 // pred_fallthru
      _
    // Predicated region
    $region30: #{ga_forward.1} parent=1 // pred_check
      _
    $region31: #{ga_forward.1} parent=1 // pred_check_branch
      %66 = sbr.rel (0) target = $region33
    $region32: #{ga_forward.1} parent=1 // pred_region
      %67 = dma.done [#allocation5], 8192
    $region33: #{ga_forward.1} parent=1 // pred_fallthru
      _
    // Predicated region
    $region34: #{ga_forward.1} parent=1 // pred_check
      _
    $region35: #{ga_forward.1} parent=1 // pred_check_branch
      %69 = sbr.rel (0) target = $region37
    $region36: #{ga_forward.1} parent=1 // pred_region
      %70 = dma.done [#allocation5], 8192
    $region37: #{ga_forward.1} parent=1 // pred_fallthru
      _
    // Predicated region
    $region38: #{ga_forward.1} parent=1 // pred_check
      _
    $region39: #{ga_forward.1} parent=1 // pred_check_branch
      %72 = sbr.rel (0) target = $region41
    $region40: #{ga_forward.1} parent=1 // pred_region
      %73 = dma.done [#allocation8], 16
    $region41: #{ga_forward.1} parent=1 // pred_fallthru
      _
    %v75 = vld [vmem:[#allocation2] sm:$0xff]
    %v76 = vld [vmem:[#allocation2 + $0x8] sm:$0xff]
    %v77 = vld [vmem:[#allocation2 + $0x10] sm:$0xff]
    %v78 = vld [vmem:[#allocation2 + $0x18] sm:$0xff]
    %v79 = vld [vmem:[#allocation4] sm:$0xf]
    %v80 = vld [vmem:[#allocation4 + $0x4] sm:$0xf]
    %v81 = vld [vmem:[#allocation4 + $0x8] sm:$0xf]
    %v82 = vld [vmem:[#allocation4 + $0xc] sm:$0xf]
    %v83 = vld [vmem:[#allocation4 + $0x10] sm:$0xf]
    %v84 = vld [vmem:[#allocation4 + $0x14] sm:$0xf]
    %v85 = vld [vmem:[#allocation4 + $0x18] sm:$0xf]
    %v86 = vld [vmem:[#allocation4 + $0x1c] sm:$0xf]
    %v87 = vld [vmem:[#allocation4 + $0x20] sm:$0xf]
    %v88 = vld [vmem:[#allocation4 + $0x24] sm:$0xf]
    %v89 = vld [vmem:[#allocation4 + $0x28] sm:$0xf]
    %v90 = vld [vmem:[#allocation4 + $0x2c] sm:$0xf]
    %v91 = vld [vmem:[#allocation4 + $0x30] sm:$0xf]
    %v92 = vld [vmem:[#allocation4 + $0x34] sm:$0xf]
    %v93 = vld [vmem:[#allocation4 + $0x38] sm:$0xf]
    %v94 = vld [vmem:[#allocation4 + $0x3c] sm:$0xf]
    %v95 = vld [vmem:[#allocation4 + $0x40] sm:$0xf]
    %v96 = vld [vmem:[#allocation4 + $0x44] sm:$0xf]
    %v97 = vld [vmem:[#allocation4 + $0x48] sm:$0xf]
    %v98 = vld [vmem:[#allocation4 + $0x4c] sm:$0xf]
    %v99 = vld [vmem:[#allocation4 + $0x50] sm:$0xf]
    %v100 = vld [vmem:[#allocation4 + $0x54] sm:$0xf]
    %v101 = vld [vmem:[#allocation4 + $0x58] sm:$0xf]
    %v102 = vld [vmem:[#allocation4 + $0x5c] sm:$0xf]
    %v103 = vld [vmem:[#allocation4 + $0x60] sm:$0xf]
    %v104 = vld [vmem:[#allocation4 + $0x64] sm:$0xf]
    %v105 = vld [vmem:[#allocation4 + $0x68] sm:$0xf]
    %v106 = vld [vmem:[#allocation4 + $0x6c] sm:$0xf]
    %v107 = vld [vmem:[#allocation4 + $0x70] sm:$0xf]
    %v108 = vld [vmem:[#allocation4 + $0x74] sm:$0xf]
    %v109 = vld [vmem:[#allocation4 + $0x78] sm:$0xf]
    %v110 = vld [vmem:[#allocation4 + $0x7c] sm:$0xf]
    %v111 = vld [vmem:[#allocation4 + $0x80] sm:$0xf]
    %v112 = vld [vmem:[#allocation4 + $0x84] sm:$0xf]
    %v113 = vld [vmem:[#allocation4 + $0x88] sm:$0xf]
    %v114 = vld [vmem:[#allocation4 + $0x8c] sm:$0xf]
    %v115 = vld [vmem:[#allocation4 + $0x90] sm:$0xf]
    %v116 = vld [vmem:[#allocation4 + $0x94] sm:$0xf]
    %v117 = vld [vmem:[#allocation4 + $0x98] sm:$0xf]
    %v118 = vld [vmem:[#allocation4 + $0x9c] sm:$0xf]
    %v119 = vld [vmem:[#allocation4 + $0xa0] sm:$0xf]
    %v120 = vld [vmem:[#allocation4 + $0xa4] sm:$0xf]
    %v121 = vld [vmem:[#allocation4 + $0xa8] sm:$0xf]
    %v122 = vld [vmem:[#allocation4 + $0xac] sm:$0xf]
    %v123 = vld [vmem:[#allocation4 + $0xb0] sm:$0xf]
    %v124 = vld [vmem:[#allocation4 + $0xb4] sm:$0xf]
    %v125 = vld [vmem:[#allocation4 + $0xb8] sm:$0xf]
    %v126 = vld [vmem:[#allocation4 + $0xbc] sm:$0xf]
    %v127 = vld [vmem:[#allocation4 + $0xc0] sm:$0xf]
    %v128 = vld [vmem:[#allocation4 + $0xc4] sm:$0xf]
    %v129 = vld [vmem:[#allocation4 + $0xc8] sm:$0xf]
    %v130 = vld [vmem:[#allocation4 + $0xcc] sm:$0xf]
    %v131 = vld [vmem:[#allocation4 + $0xd0] sm:$0xf]
    %v132 = vld [vmem:[#allocation4 + $0xd4] sm:$0xf]
    %v133 = vld [vmem:[#allocation4 + $0xd8] sm:$0xf]
    %v134 = vld [vmem:[#allocation4 + $0xdc] sm:$0xf]
    %v135 = vld [vmem:[#allocation4 + $0xe0] sm:$0xf]
    %v136 = vld [vmem:[#allocation4 + $0xe4] sm:$0xf]
    %v137 = vld [vmem:[#allocation4 + $0xe8] sm:$0xf]
    %v138 = vld [vmem:[#allocation4 + $0xec] sm:$0xf]
    %v139 = vld [vmem:[#allocation4 + $0xf0] sm:$0xf]
    %v140 = vld [vmem:[#allocation4 + $0xf4] sm:$0xf]
    %v141 = vld [vmem:[#allocation4 + $0xf8] sm:$0xf]
    %v142 = vld [vmem:[#allocation4 + $0xfc] sm:$0xf]
    %v143 = vld [vmem:[#allocation4 + $0x100] sm:$0xf]
    %v144 = vld [vmem:[#allocation4 + $0x104] sm:$0xf]
    %v145 = vld [vmem:[#allocation4 + $0x108] sm:$0xf]
    %v146 = vld [vmem:[#allocation4 + $0x10c] sm:$0xf]
    %v147 = vld [vmem:[#allocation4 + $0x110] sm:$0xf]
    %v148 = vld [vmem:[#allocation4 + $0x114] sm:$0xf]
    %v149 = vld [vmem:[#allocation4 + $0x118] sm:$0xf]
    %v150 = vld [vmem:[#allocation4 + $0x11c] sm:$0xf]
    %v151 = vld [vmem:[#allocation4 + $0x120] sm:$0xf]
    %v152 = vld [vmem:[#allocation4 + $0x124] sm:$0xf]
    %v153 = vld [vmem:[#allocation4 + $0x128] sm:$0xf]
    %v154 = vld [vmem:[#allocation4 + $0x12c] sm:$0xf]
    %v155 = vld [vmem:[#allocation4 + $0x130] sm:$0xf]
    %v156 = vld [vmem:[#allocation4 + $0x134] sm:$0xf]
    %v157 = vld [vmem:[#allocation4 + $0x138] sm:$0xf]
    %v158 = vld [vmem:[#allocation4 + $0x13c] sm:$0xf]
    %v159 = vld [vmem:[#allocation4 + $0x140] sm:$0xf]
    %v160 = vld [vmem:[#allocation4 + $0x144] sm:$0xf]
    %v161 = vld [vmem:[#allocation4 + $0x148] sm:$0xf]
    %v162 = vld [vmem:[#allocation4 + $0x14c] sm:$0xf]
    %v163 = vld [vmem:[#allocation4 + $0x150] sm:$0xf]
    %v164 = vld [vmem:[#allocation4 + $0x154] sm:$0xf]
    %v165 = vld [vmem:[#allocation4 + $0x158] sm:$0xf]
    %v166 = vld [vmem:[#allocation4 + $0x15c] sm:$0xf]
    %v167 = vld [vmem:[#allocation4 + $0x160] sm:$0xf]
    %v168 = vld [vmem:[#allocation4 + $0x164] sm:$0xf]
    %v169 = vld [vmem:[#allocation4 + $0x168] sm:$0xf]
    %v170 = vld [vmem:[#allocation4 + $0x16c] sm:$0xf]
    %v171 = vld [vmem:[#allocation4 + $0x170] sm:$0xf]
    %v172 = vld [vmem:[#allocation4 + $0x174] sm:$0xf]
    %v173 = vld [vmem:[#allocation4 + $0x178] sm:$0xf]
    %v174 = vld [vmem:[#allocation4 + $0x17c] sm:$0xf]
    %v175 = vld [vmem:[#allocation4 + $0x180] sm:$0xf]
    %v176 = vld [vmem:[#allocation4 + $0x184] sm:$0xf]
    %v177 = vld [vmem:[#allocation4 + $0x188] sm:$0xf]
    %v178 = vld [vmem:[#allocation4 + $0x18c] sm:$0xf]
    %v179 = vld [vmem:[#allocation4 + $0x190] sm:$0xf]
    %v180 = vld [vmem:[#allocation4 + $0x194] sm:$0xf]
    %v181 = vld [vmem:[#allocation4 + $0x198] sm:$0xf]
    %v182 = vld [vmem:[#allocation4 + $0x19c] sm:$0xf]
    %v183 = vld [vmem:[#allocation4 + $0x1a0] sm:$0xf]
    %v184 = vld [vmem:[#allocation4 + $0x1a4] sm:$0xf]
    %v185 = vld [vmem:[#allocation4 + $0x1a8] sm:$0xf]
    %v186 = vld [vmem:[#allocation4 + $0x1ac] sm:$0xf]
    %v187 = vld [vmem:[#allocation4 + $0x1b0] sm:$0xf]
    %v188 = vld [vmem:[#allocation4 + $0x1b4] sm:$0xf]
    %v189 = vld [vmem:[#allocation4 + $0x1b8] sm:$0xf]
    %v190 = vld [vmem:[#allocation4 + $0x1bc] sm:$0xf]
    %v191 = vld [vmem:[#allocation4 + $0x1c0] sm:$0xf]
    %v192 = vld [vmem:[#allocation4 + $0x1c4] sm:$0xf]
    %v193 = vld [vmem:[#allocation4 + $0x1c8] sm:$0xf]
    %v194 = vld [vmem:[#allocation4 + $0x1cc] sm:$0xf]
    %v195 = vld [vmem:[#allocation4 + $0x1d0] sm:$0xf]
    %v196 = vld [vmem:[#allocation4 + $0x1d4] sm:$0xf]
    %v197 = vld [vmem:[#allocation4 + $0x1d8] sm:$0xf]
    %v198 = vld [vmem:[#allocation4 + $0x1dc] sm:$0xf]
    %v199 = vld [vmem:[#allocation4 + $0x1e0] sm:$0xf]
    %v200 = vld [vmem:[#allocation4 + $0x1e4] sm:$0xf]
    %v201 = vld [vmem:[#allocation4 + $0x1e8] sm:$0xf]
    %v202 = vld [vmem:[#allocation4 + $0x1ec] sm:$0xf]
    %v203 = vld [vmem:[#allocation4 + $0x1f0] sm:$0xf]
    %v204 = vld [vmem:[#allocation4 + $0x1f4] sm:$0xf]
    %v205 = vld [vmem:[#allocation4 + $0x1f8] sm:$0xf]
    %v206 = vld [vmem:[#allocation4 + $0x1fc] sm:$0xf]
    %v207 = vld [vmem:[%s3] sm:$0x1]
    %v209 = vlaneseq
    %v210 = vshrl.u32 %v209, 7
    %v211 = vsub.s32 0, %v210
    %v212 = vrot.slane %v207, %v211
    %v218 = vunpack.c.l.b16 %v75
    %v219 = vunpack.c.h.b16 %v75
    %v220 = vunpack.c.l.b16 %v76
    %v221 = vunpack.c.h.b16 %v76
    %v222 = vunpack.c.l.b16 %v77
    %v223 = vunpack.c.h.b16 %v77
    %v224 = vunpack.c.l.b16 %v78
    %v225 = vunpack.c.h.b16 %v78
    %v226 = vpack.c.b16 %v218, %v218
    %v227 = vpack.c.b16 %v219, %v219
    %v228 = vpack.c.b16 %v220, %v220
    %v229 = vpack.c.b16 %v221, %v221
    %v230 = vpack.c.b16 %v222, %v222
    %v231 = vpack.c.b16 %v223, %v223
    %v232 = vpack.c.b16 %v224, %v224
    %v233 = vpack.c.b16 %v225, %v225
    %v370 = vunpack.c.l.b16 %v79
    %v371 = vunpack.c.l.b16 %v80
    %v372 = vunpack.c.l.b16 %v81
    %v373 = vunpack.c.l.b16 %v82
    %v374 = vunpack.c.l.b16 %v83
    %v375 = vunpack.c.l.b16 %v84
    %v376 = vunpack.c.l.b16 %v85
    %v377 = vunpack.c.l.b16 %v86
    %v378 = vunpack.c.l.b16 %v87
    %v379 = vunpack.c.l.b16 %v88
    %v380 = vunpack.c.l.b16 %v89
    %v381 = vunpack.c.l.b16 %v90
    %v382 = vunpack.c.l.b16 %v91
    %v383 = vunpack.c.l.b16 %v92
    %v384 = vunpack.c.l.b16 %v93
    %v385 = vunpack.c.l.b16 %v94
    %v386 = vunpack.c.l.b16 %v95
    %v387 = vunpack.c.l.b16 %v96
    %v388 = vunpack.c.l.b16 %v97
    %v389 = vunpack.c.l.b16 %v98
    %v390 = vunpack.c.l.b16 %v99
    %v391 = vunpack.c.l.b16 %v100
    %v392 = vunpack.c.l.b16 %v101
    %v393 = vunpack.c.l.b16 %v102
    %v394 = vunpack.c.l.b16 %v103
    %v395 = vunpack.c.l.b16 %v104
    %v396 = vunpack.c.l.b16 %v105
    %v397 = vunpack.c.l.b16 %v106
    %v398 = vunpack.c.l.b16 %v107
    %v399 = vunpack.c.l.b16 %v108
    %v400 = vunpack.c.l.b16 %v109
    %v401 = vunpack.c.l.b16 %v110
    %v402 = vunpack.c.l.b16 %v111
    %v403 = vunpack.c.l.b16 %v112
    %v404 = vunpack.c.l.b16 %v113
    %v405 = vunpack.c.l.b16 %v114
    %v406 = vunpack.c.l.b16 %v115
    %v407 = vunpack.c.l.b16 %v116
    %v408 = vunpack.c.l.b16 %v117
    %v409 = vunpack.c.l.b16 %v118
    %v410 = vunpack.c.l.b16 %v119
    %v411 = vunpack.c.l.b16 %v120
    %v412 = vunpack.c.l.b16 %v121
    %v413 = vunpack.c.l.b16 %v122
    %v414 = vunpack.c.l.b16 %v123
    %v415 = vunpack.c.l.b16 %v124
    %v416 = vunpack.c.l.b16 %v125
    %v417 = vunpack.c.l.b16 %v126
    %v418 = vunpack.c.l.b16 %v127
    %v419 = vunpack.c.l.b16 %v128
    %v420 = vunpack.c.l.b16 %v129
    %v421 = vunpack.c.l.b16 %v130
    %v422 = vunpack.c.l.b16 %v131
    %v423 = vunpack.c.l.b16 %v132
    %v424 = vunpack.c.l.b16 %v133
    %v425 = vunpack.c.l.b16 %v134
    %v426 = vunpack.c.l.b16 %v135
    %v427 = vunpack.c.l.b16 %v136
    %v428 = vunpack.c.l.b16 %v137
    %v429 = vunpack.c.l.b16 %v138
    %v430 = vunpack.c.l.b16 %v139
    %v431 = vunpack.c.l.b16 %v140
    %v432 = vunpack.c.l.b16 %v141
    %v433 = vunpack.c.l.b16 %v142
    %v434 = vunpack.c.l.b16 %v143
    %v435 = vunpack.c.l.b16 %v144
    %v436 = vunpack.c.l.b16 %v145
    %v437 = vunpack.c.l.b16 %v146
    %v438 = vunpack.c.l.b16 %v147
    %v439 = vunpack.c.l.b16 %v148
    %v440 = vunpack.c.l.b16 %v149
    %v441 = vunpack.c.l.b16 %v150
    %v442 = vunpack.c.l.b16 %v151
    %v443 = vunpack.c.l.b16 %v152
    %v444 = vunpack.c.l.b16 %v153
    %v445 = vunpack.c.l.b16 %v154
    %v446 = vunpack.c.l.b16 %v155
    %v447 = vunpack.c.l.b16 %v156
    %v448 = vunpack.c.l.b16 %v157
    %v449 = vunpack.c.l.b16 %v158
    %v450 = vunpack.c.l.b16 %v159
    %v451 = vunpack.c.l.b16 %v160
    %v452 = vunpack.c.l.b16 %v161
    %v453 = vunpack.c.l.b16 %v162
    %v454 = vunpack.c.l.b16 %v163
    %v455 = vunpack.c.l.b16 %v164
    %v456 = vunpack.c.l.b16 %v165
    %v457 = vunpack.c.l.b16 %v166
    %v458 = vunpack.c.l.b16 %v167
    %v459 = vunpack.c.l.b16 %v168
    %v460 = vunpack.c.l.b16 %v169
    %v461 = vunpack.c.l.b16 %v170
    %v462 = vunpack.c.l.b16 %v171
    %v463 = vunpack.c.l.b16 %v172
    %v464 = vunpack.c.l.b16 %v173
    %v465 = vunpack.c.l.b16 %v174
    %v466 = vunpack.c.l.b16 %v175
    %v467 = vunpack.c.l.b16 %v176
    %v468 = vunpack.c.l.b16 %v177
    %v469 = vunpack.c.l.b16 %v178
    %v470 = vunpack.c.l.b16 %v179
    %v471 = vunpack.c.l.b16 %v180
    %v472 = vunpack.c.l.b16 %v181
    %v473 = vunpack.c.l.b16 %v182
    %v474 = vunpack.c.l.b16 %v183
    %v475 = vunpack.c.l.b16 %v184
    %v476 = vunpack.c.l.b16 %v185
    %v477 = vunpack.c.l.b16 %v186
    %v478 = vunpack.c.l.b16 %v187
    %v479 = vunpack.c.l.b16 %v188
    %v480 = vunpack.c.l.b16 %v189
    %v481 = vunpack.c.l.b16 %v190
    %v482 = vunpack.c.l.b16 %v191
    %v483 = vunpack.c.l.b16 %v192
    %v484 = vunpack.c.l.b16 %v193
    %v485 = vunpack.c.l.b16 %v194
    %v486 = vunpack.c.l.b16 %v195
    %v487 = vunpack.c.l.b16 %v196
    %v488 = vunpack.c.l.b16 %v197
    %v489 = vunpack.c.l.b16 %v198
    %v490 = vunpack.c.l.b16 %v199
    %v491 = vunpack.c.l.b16 %v200
    %v492 = vunpack.c.l.b16 %v201
    %v493 = vunpack.c.l.b16 %v202
    %v494 = vunpack.c.l.b16 %v203
    %v495 = vunpack.c.l.b16 %v204
    %v496 = vunpack.c.l.b16 %v205
    %v497 = vunpack.c.l.b16 %v206
    %v498 = vpack.c.b16 %v371, %v370
    %v499 = vpack.c.b16 %v373, %v372
    %v500 = vpack.c.b16 %v375, %v374
    %v501 = vpack.c.b16 %v377, %v376
    %v502 = vpack.c.b16 %v379, %v378
    %v503 = vpack.c.b16 %v381, %v380
    %v504 = vpack.c.b16 %v383, %v382
    %v505 = vpack.c.b16 %v385, %v384
    %v506 = vpack.c.b16 %v387, %v386
    %v507 = vpack.c.b16 %v389, %v388
    %v508 = vpack.c.b16 %v391, %v390
    %v509 = vpack.c.b16 %v393, %v392
    %v510 = vpack.c.b16 %v395, %v394
    %v511 = vpack.c.b16 %v397, %v396
    %v512 = vpack.c.b16 %v399, %v398
    %v513 = vpack.c.b16 %v401, %v400
    %v514 = vpack.c.b16 %v403, %v402
    %v515 = vpack.c.b16 %v405, %v404
    %v516 = vpack.c.b16 %v407, %v406
    %v517 = vpack.c.b16 %v409, %v408
    %v518 = vpack.c.b16 %v411, %v410
    %v519 = vpack.c.b16 %v413, %v412
    %v520 = vpack.c.b16 %v415, %v414
    %v521 = vpack.c.b16 %v417, %v416
    %v522 = vpack.c.b16 %v419, %v418
    %v523 = vpack.c.b16 %v421, %v420
    %v524 = vpack.c.b16 %v423, %v422
    %v525 = vpack.c.b16 %v425, %v424
    %v526 = vpack.c.b16 %v427, %v426
    %v527 = vpack.c.b16 %v429, %v428
    %v528 = vpack.c.b16 %v431, %v430
    %v529 = vpack.c.b16 %v433, %v432
    %v530 = vpack.c.b16 %v435, %v434
    %v531 = vpack.c.b16 %v437, %v436
    %v532 = vpack.c.b16 %v439, %v438
    %v533 = vpack.c.b16 %v441, %v440
    %v534 = vpack.c.b16 %v443, %v442
    %v535 = vpack.c.b16 %v445, %v444
    %v536 = vpack.c.b16 %v447, %v446
    %v537 = vpack.c.b16 %v449, %v448
    %v538 = vpack.c.b16 %v451, %v450
    %v539 = vpack.c.b16 %v453, %v452
    %v540 = vpack.c.b16 %v455, %v454
    %v541 = vpack.c.b16 %v457, %v456
    %v542 = vpack.c.b16 %v459, %v458
    %v543 = vpack.c.b16 %v461, %v460
    %v544 = vpack.c.b16 %v463, %v462
    %v545 = vpack.c.b16 %v465, %v464
    %v546 = vpack.c.b16 %v467, %v466
    %v547 = vpack.c.b16 %v469, %v468
    %v548 = vpack.c.b16 %v471, %v470
    %v549 = vpack.c.b16 %v473, %v472
    %v550 = vpack.c.b16 %v475, %v474
    %v551 = vpack.c.b16 %v477, %v476
    %v552 = vpack.c.b16 %v479, %v478
    %v553 = vpack.c.b16 %v481, %v480
    %v554 = vpack.c.b16 %v483, %v482
    %v555 = vpack.c.b16 %v485, %v484
    %v556 = vpack.c.b16 %v487, %v486
    %v557 = vpack.c.b16 %v489, %v488
    %v558 = vpack.c.b16 %v491, %v490
    %v559 = vpack.c.b16 %v493, %v492
    %v560 = vpack.c.b16 %v495, %v494
    %v561 = vpack.c.b16 %v497, %v496
    %626 = vmatprep.subr.bf16.mxu0 0
    %627 = vmatpush1.bf16.msra.mxu0 %v505
    %628 = vmatprep.subr.bf16.mxu0 0
    %629 = vmatpush1.bf16.msra.mxu0 %v504
    %630 = vmatprep.subr.bf16.mxu0 0
    %631 = vmatpush1.bf16.msra.mxu0 %v503
    %632 = vmatprep.subr.bf16.mxu0 0
    %633 = vmatpush1.bf16.msra.mxu0 %v502
    %634 = vmatprep.subr.bf16.mxu0 0
    %635 = vmatpush1.bf16.msra.mxu0 %v501
    %636 = vmatprep.subr.bf16.mxu0 0
    %637 = vmatpush1.bf16.msra.mxu0 %v500
    %638 = vmatprep.subr.bf16.mxu0 0
    %639 = vmatpush1.bf16.msra.mxu0 %v499
    %640 = vmatprep.subr.bf16.mxu0 0
    %641 = vmatpush1.bf16.msra.mxu0 %v498
    %642 = vmatprep.subr.bf16.mxu0 0
    %643 = vmatpush2.bf16.msra.mxu0 %v513
    %644 = vmatprep.subr.bf16.mxu0 0
    %645 = vmatpush2.bf16.msra.mxu0 %v512
    %646 = vmatprep.subr.bf16.mxu0 0
    %647 = vmatpush2.bf16.msra.mxu0 %v511
    %648 = vmatprep.subr.bf16.mxu0 0
    %649 = vmatpush2.bf16.msra.mxu0 %v510
    %650 = vmatprep.subr.bf16.mxu0 0
    %651 = vmatpush2.bf16.msra.mxu0 %v509
    %652 = vmatprep.subr.bf16.mxu0 0
    %653 = vmatpush2.bf16.msra.mxu0 %v508
    %654 = vmatprep.subr.bf16.mxu0 0
    %655 = vmatpush2.bf16.msra.mxu0 %v507
    %656 = vmatprep.subr.bf16.mxu0 0
    %657 = vmatpush2.bf16.msra.mxu0 %v506
    %658 = vmatprep.mubr.bf16.mxu0 %v227
    %659 = vmatmul.mubr.bf16.gmra.mxu0 %v226
    %v660 = vpop.f32.mrf.mxu0
    %v661 = vadd.f32 %v212, %v660
    %v662 = vpop.f32.mrf.mxu0
    %v663 = vpop.f32.mrf.mxu0
    %v664 = vpop.f32.mrf.mxu0
    %665 = vdwg.mxu0
    %666 = vmatprep.subr.bf16.mxu0 0
    %667 = vmatpush1.bf16.msra.mxu0 %v521
    %668 = vmatprep.subr.bf16.mxu0 0
    %669 = vmatpush1.bf16.msra.mxu0 %v520
    %670 = vmatprep.subr.bf16.mxu0 0
    %671 = vmatpush1.bf16.msra.mxu0 %v519
    %672 = vmatprep.subr.bf16.mxu0 0
    %673 = vmatpush1.bf16.msra.mxu0 %v518
    %674 = vmatprep.subr.bf16.mxu0 0
    %675 = vmatpush1.bf16.msra.mxu0 %v517
    %676 = vmatprep.subr.bf16.mxu0 0
    %677 = vmatpush1.bf16.msra.mxu0 %v516
    %678 = vmatprep.subr.bf16.mxu0 0
    %679 = vmatpush1.bf16.msra.mxu0 %v515
    %680 = vmatprep.subr.bf16.mxu0 0
    %681 = vmatpush1.bf16.msra.mxu0 %v514
    %682 = vmatprep.subr.bf16.mxu0 0
    %683 = vmatpush2.bf16.msra.mxu0 %v529
    %684 = vmatprep.subr.bf16.mxu0 0
    %685 = vmatpush2.bf16.msra.mxu0 %v528
    %686 = vmatprep.subr.bf16.mxu0 0
    %687 = vmatpush2.bf16.msra.mxu0 %v527
    %688 = vmatprep.subr.bf16.mxu0 0
    %689 = vmatpush2.bf16.msra.mxu0 %v526
    %690 = vmatprep.subr.bf16.mxu0 0
    %691 = vmatpush2.bf16.msra.mxu0 %v525
    %692 = vmatprep.subr.bf16.mxu0 0
    %693 = vmatpush2.bf16.msra.mxu0 %v524
    %694 = vmatprep.subr.bf16.mxu0 0
    %695 = vmatpush2.bf16.msra.mxu0 %v523
    %696 = vmatprep.subr.bf16.mxu0 0
    %697 = vmatpush2.bf16.msra.mxu0 %v522
    %698 = vmatprep.mubr.bf16.mxu0 %v229
    %699 = vmatmul.mubr.bf16.gmra.mxu0 %v228
    %v700 = vpop.f32.mrf.mxu0
    %v701 = vadd.f32 %v661, %v700
    %v702 = vpop.f32.mrf.mxu0
    %v703 = vpop.f32.mrf.mxu0
    %v704 = vpop.f32.mrf.mxu0
    %705 = vdwg.mxu0
    %706 = vmatprep.subr.bf16.mxu0 0
    %707 = vmatpush1.bf16.msra.mxu0 %v537
    %708 = vmatprep.subr.bf16.mxu0 0
    %709 = vmatpush1.bf16.msra.mxu0 %v536
    %710 = vmatprep.subr.bf16.mxu0 0
    %711 = vmatpush1.bf16.msra.mxu0 %v535
    %712 = vmatprep.subr.bf16.mxu0 0
    %713 = vmatpush1.bf16.msra.mxu0 %v534
    %714 = vmatprep.subr.bf16.mxu0 0
    %715 = vmatpush1.bf16.msra.mxu0 %v533
    %716 = vmatprep.subr.bf16.mxu0 0
    %717 = vmatpush1.bf16.msra.mxu0 %v532
    %718 = vmatprep.subr.bf16.mxu0 0
    %719 = vmatpush1.bf16.msra.mxu0 %v531
    %720 = vmatprep.subr.bf16.mxu0 0
    %721 = vmatpush1.bf16.msra.mxu0 %v530
    %722 = vmatprep.subr.bf16.mxu0 0
    %723 = vmatpush2.bf16.msra.mxu0 %v545
    %724 = vmatprep.subr.bf16.mxu0 0
    %725 = vmatpush2.bf16.msra.mxu0 %v544
    %726 = vmatprep.subr.bf16.mxu0 0
    %727 = vmatpush2.bf16.msra.mxu0 %v543
    %728 = vmatprep.subr.bf16.mxu0 0
    %729 = vmatpush2.bf16.msra.mxu0 %v542
    %730 = vmatprep.subr.bf16.mxu0 0
    %731 = vmatpush2.bf16.msra.mxu0 %v541
    %732 = vmatprep.subr.bf16.mxu0 0
    %733 = vmatpush2.bf16.msra.mxu0 %v540
    %734 = vmatprep.subr.bf16.mxu0 0
    %735 = vmatpush2.bf16.msra.mxu0 %v539
    %736 = vmatprep.subr.bf16.mxu0 0
    %737 = vmatpush2.bf16.msra.mxu0 %v538
    %738 = vmatprep.mubr.bf16.mxu0 %v231
    %739 = vmatmul.mubr.bf16.gmra.mxu0 %v230
    %v740 = vpop.f32.mrf.mxu0
    %v741 = vadd.f32 %v701, %v740
    %v742 = vpop.f32.mrf.mxu0
    %v743 = vpop.f32.mrf.mxu0
    %v744 = vpop.f32.mrf.mxu0
    %745 = vdwg.mxu0
    %746 = vmatprep.subr.bf16.mxu0 0
    %747 = vmatpush1.bf16.msra.mxu0 %v553
    %748 = vmatprep.subr.bf16.mxu0 0
    %749 = vmatpush1.bf16.msra.mxu0 %v552
    %750 = vmatprep.subr.bf16.mxu0 0
    %751 = vmatpush1.bf16.msra.mxu0 %v551
    %752 = vmatprep.subr.bf16.mxu0 0
    %753 = vmatpush1.bf16.msra.mxu0 %v550
    %754 = vmatprep.subr.bf16.mxu0 0
    %755 = vmatpush1.bf16.msra.mxu0 %v549
    %756 = vmatprep.subr.bf16.mxu0 0
    %757 = vmatpush1.bf16.msra.mxu0 %v548
    %758 = vmatprep.subr.bf16.mxu0 0
    %759 = vmatpush1.bf16.msra.mxu0 %v547
    %760 = vmatprep.subr.bf16.mxu0 0
    %761 = vmatpush1.bf16.msra.mxu0 %v546
    %762 = vmatprep.subr.bf16.mxu0 0
    %763 = vmatpush2.bf16.msra.mxu0 %v561
    %764 = vmatprep.subr.bf16.mxu0 0
    %765 = vmatpush2.bf16.msra.mxu0 %v560
    %766 = vmatprep.subr.bf16.mxu0 0
    %767 = vmatpush2.bf16.msra.mxu0 %v559
    %768 = vmatprep.subr.bf16.mxu0 0
    %769 = vmatpush2.bf16.msra.mxu0 %v558
    %770 = vmatprep.subr.bf16.mxu0 0
    %771 = vmatpush2.bf16.msra.mxu0 %v557
    %772 = vmatprep.subr.bf16.mxu0 0
    %773 = vmatpush2.bf16.msra.mxu0 %v556
    %774 = vmatprep.subr.bf16.mxu0 0
    %775 = vmatpush2.bf16.msra.mxu0 %v555
    %776 = vmatprep.subr.bf16.mxu0 0
    %777 = vmatpush2.bf16.msra.mxu0 %v554
    %778 = vmatprep.mubr.bf16.mxu0 %v233
    %779 = vmatmul.mubr.bf16.gmra.mxu0 %v232
    %v780 = vpop.f32.mrf.mxu0
    %v781 = vadd.f32 %v741, %v780
    %v782 = vpop.f32.mrf.mxu0
    %v783 = vpop.f32.mrf.mxu0
    %v784 = vpop.f32.mrf.mxu0
    %785 = vdwg.mxu0
    %v786 = vld [vmem:[#allocation6] sm:$0xf]
    %v787 = vld [vmem:[#allocation6 + $0x4] sm:$0xf]
    %v788 = vld [vmem:[#allocation6 + $0x8] sm:$0xf]
    %v789 = vld [vmem:[#allocation6 + $0xc] sm:$0xf]
    %v790 = vld [vmem:[#allocation6 + $0x10] sm:$0xf]
    %v791 = vld [vmem:[#allocation6 + $0x14] sm:$0xf]
    %v792 = vld [vmem:[#allocation6 + $0x18] sm:$0xf]
    %v793 = vld [vmem:[#allocation6 + $0x1c] sm:$0xf]
    %v794 = vld [vmem:[#allocation6 + $0x20] sm:$0xf]
    %v795 = vld [vmem:[#allocation6 + $0x24] sm:$0xf]
    %v796 = vld [vmem:[#allocation6 + $0x28] sm:$0xf]
    %v797 = vld [vmem:[#allocation6 + $0x2c] sm:$0xf]
    %v798 = vld [vmem:[#allocation6 + $0x30] sm:$0xf]
    %v799 = vld [vmem:[#allocation6 + $0x34] sm:$0xf]
    %v800 = vld [vmem:[#allocation6 + $0x38] sm:$0xf]
    %v801 = vld [vmem:[#allocation6 + $0x3c] sm:$0xf]
    %v802 = vld [vmem:[#allocation6 + $0x40] sm:$0xf]
    %v803 = vld [vmem:[#allocation6 + $0x44] sm:$0xf]
    %v804 = vld [vmem:[#allocation6 + $0x48] sm:$0xf]
    %v805 = vld [vmem:[#allocation6 + $0x4c] sm:$0xf]
    %v806 = vld [vmem:[#allocation6 + $0x50] sm:$0xf]
    %v807 = vld [vmem:[#allocation6 + $0x54] sm:$0xf]
    %v808 = vld [vmem:[#allocation6 + $0x58] sm:$0xf]
    %v809 = vld [vmem:[#allocation6 + $0x5c] sm:$0xf]
    %v810 = vld [vmem:[#allocation6 + $0x60] sm:$0xf]
    %v811 = vld [vmem:[#allocation6 + $0x64] sm:$0xf]
    %v812 = vld [vmem:[#allocation6 + $0x68] sm:$0xf]
    %v813 = vld [vmem:[#allocation6 + $0x6c] sm:$0xf]
    %v814 = vld [vmem:[#allocation6 + $0x70] sm:$0xf]
    %v815 = vld [vmem:[#allocation6 + $0x74] sm:$0xf]
    %v816 = vld [vmem:[#allocation6 + $0x78] sm:$0xf]
    %v817 = vld [vmem:[#allocation6 + $0x7c] sm:$0xf]
    %v818 = vld [vmem:[#allocation6 + $0x80] sm:$0xf]
    %v819 = vld [vmem:[#allocation6 + $0x84] sm:$0xf]
    %v820 = vld [vmem:[#allocation6 + $0x88] sm:$0xf]
    %v821 = vld [vmem:[#allocation6 + $0x8c] sm:$0xf]
    %v822 = vld [vmem:[#allocation6 + $0x90] sm:$0xf]
    %v823 = vld [vmem:[#allocation6 + $0x94] sm:$0xf]
    %v824 = vld [vmem:[#allocation6 + $0x98] sm:$0xf]
    %v825 = vld [vmem:[#allocation6 + $0x9c] sm:$0xf]
    %v826 = vld [vmem:[#allocation6 + $0xa0] sm:$0xf]
    %v827 = vld [vmem:[#allocation6 + $0xa4] sm:$0xf]
    %v828 = vld [vmem:[#allocation6 + $0xa8] sm:$0xf]
    %v829 = vld [vmem:[#allocation6 + $0xac] sm:$0xf]
    %v830 = vld [vmem:[#allocation6 + $0xb0] sm:$0xf]
    %v831 = vld [vmem:[#allocation6 + $0xb4] sm:$0xf]
    %v832 = vld [vmem:[#allocation6 + $0xb8] sm:$0xf]
    %v833 = vld [vmem:[#allocation6 + $0xbc] sm:$0xf]
    %v834 = vld [vmem:[#allocation6 + $0xc0] sm:$0xf]
    %v835 = vld [vmem:[#allocation6 + $0xc4] sm:$0xf]
    %v836 = vld [vmem:[#allocation6 + $0xc8] sm:$0xf]
    %v837 = vld [vmem:[#allocation6 + $0xcc] sm:$0xf]
    %v838 = vld [vmem:[#allocation6 + $0xd0] sm:$0xf]
    %v839 = vld [vmem:[#allocation6 + $0xd4] sm:$0xf]
    %v840 = vld [vmem:[#allocation6 + $0xd8] sm:$0xf]
    %v841 = vld [vmem:[#allocation6 + $0xdc] sm:$0xf]
    %v842 = vld [vmem:[#allocation6 + $0xe0] sm:$0xf]
    %v843 = vld [vmem:[#allocation6 + $0xe4] sm:$0xf]
    %v844 = vld [vmem:[#allocation6 + $0xe8] sm:$0xf]
    %v845 = vld [vmem:[#allocation6 + $0xec] sm:$0xf]
    %v846 = vld [vmem:[#allocation6 + $0xf0] sm:$0xf]
    %v847 = vld [vmem:[#allocation6 + $0xf4] sm:$0xf]
    %v848 = vld [vmem:[#allocation6 + $0xf8] sm:$0xf]
    %v849 = vld [vmem:[#allocation6 + $0xfc] sm:$0xf]
    %v850 = vld [vmem:[#allocation6 + $0x100] sm:$0xf]
    %v851 = vld [vmem:[#allocation6 + $0x104] sm:$0xf]
    %v852 = vld [vmem:[#allocation6 + $0x108] sm:$0xf]
    %v853 = vld [vmem:[#allocation6 + $0x10c] sm:$0xf]
    %v854 = vld [vmem:[#allocation6 + $0x110] sm:$0xf]
    %v855 = vld [vmem:[#allocation6 + $0x114] sm:$0xf]
    %v856 = vld [vmem:[#allocation6 + $0x118] sm:$0xf]
    %v857 = vld [vmem:[#allocation6 + $0x11c] sm:$0xf]
    %v858 = vld [vmem:[#allocation6 + $0x120] sm:$0xf]
    %v859 = vld [vmem:[#allocation6 + $0x124] sm:$0xf]
    %v860 = vld [vmem:[#allocation6 + $0x128] sm:$0xf]
    %v861 = vld [vmem:[#allocation6 + $0x12c] sm:$0xf]
    %v862 = vld [vmem:[#allocation6 + $0x130] sm:$0xf]
    %v863 = vld [vmem:[#allocation6 + $0x134] sm:$0xf]
    %v864 = vld [vmem:[#allocation6 + $0x138] sm:$0xf]
    %v865 = vld [vmem:[#allocation6 + $0x13c] sm:$0xf]
    %v866 = vld [vmem:[#allocation6 + $0x140] sm:$0xf]
    %v867 = vld [vmem:[#allocation6 + $0x144] sm:$0xf]
    %v868 = vld [vmem:[#allocation6 + $0x148] sm:$0xf]
    %v869 = vld [vmem:[#allocation6 + $0x14c] sm:$0xf]
    %v870 = vld [vmem:[#allocation6 + $0x150] sm:$0xf]
    %v871 = vld [vmem:[#allocation6 + $0x154] sm:$0xf]
    %v872 = vld [vmem:[#allocation6 + $0x158] sm:$0xf]
    %v873 = vld [vmem:[#allocation6 + $0x15c] sm:$0xf]
    %v874 = vld [vmem:[#allocation6 + $0x160] sm:$0xf]
    %v875 = vld [vmem:[#allocation6 + $0x164] sm:$0xf]
    %v876 = vld [vmem:[#allocation6 + $0x168] sm:$0xf]
    %v877 = vld [vmem:[#allocation6 + $0x16c] sm:$0xf]
    %v878 = vld [vmem:[#allocation6 + $0x170] sm:$0xf]
    %v879 = vld [vmem:[#allocation6 + $0x174] sm:$0xf]
    %v880 = vld [vmem:[#allocation6 + $0x178] sm:$0xf]
    %v881 = vld [vmem:[#allocation6 + $0x17c] sm:$0xf]
    %v882 = vld [vmem:[#allocation6 + $0x180] sm:$0xf]
    %v883 = vld [vmem:[#allocation6 + $0x184] sm:$0xf]
    %v884 = vld [vmem:[#allocation6 + $0x188] sm:$0xf]
    %v885 = vld [vmem:[#allocation6 + $0x18c] sm:$0xf]
    %v886 = vld [vmem:[#allocation6 + $0x190] sm:$0xf]
    %v887 = vld [vmem:[#allocation6 + $0x194] sm:$0xf]
    %v888 = vld [vmem:[#allocation6 + $0x198] sm:$0xf]
    %v889 = vld [vmem:[#allocation6 + $0x19c] sm:$0xf]
    %v890 = vld [vmem:[#allocation6 + $0x1a0] sm:$0xf]
    %v891 = vld [vmem:[#allocation6 + $0x1a4] sm:$0xf]
    %v892 = vld [vmem:[#allocation6 + $0x1a8] sm:$0xf]
    %v893 = vld [vmem:[#allocation6 + $0x1ac] sm:$0xf]
    %v894 = vld [vmem:[#allocation6 + $0x1b0] sm:$0xf]
    %v895 = vld [vmem:[#allocation6 + $0x1b4] sm:$0xf]
    %v896 = vld [vmem:[#allocation6 + $0x1b8] sm:$0xf]
    %v897 = vld [vmem:[#allocation6 + $0x1bc] sm:$0xf]
    %v898 = vld [vmem:[#allocation6 + $0x1c0] sm:$0xf]
    %v899 = vld [vmem:[#allocation6 + $0x1c4] sm:$0xf]
    %v900 = vld [vmem:[#allocation6 + $0x1c8] sm:$0xf]
    %v901 = vld [vmem:[#allocation6 + $0x1cc] sm:$0xf]
    %v902 = vld [vmem:[#allocation6 + $0x1d0] sm:$0xf]
    %v903 = vld [vmem:[#allocation6 + $0x1d4] sm:$0xf]
    %v904 = vld [vmem:[#allocation6 + $0x1d8] sm:$0xf]
    %v905 = vld [vmem:[#allocation6 + $0x1dc] sm:$0xf]
    %v906 = vld [vmem:[#allocation6 + $0x1e0] sm:$0xf]
    %v907 = vld [vmem:[#allocation6 + $0x1e4] sm:$0xf]
    %v908 = vld [vmem:[#allocation6 + $0x1e8] sm:$0xf]
    %v909 = vld [vmem:[#allocation6 + $0x1ec] sm:$0xf]
    %v910 = vld [vmem:[#allocation6 + $0x1f0] sm:$0xf]
    %v911 = vld [vmem:[#allocation6 + $0x1f4] sm:$0xf]
    %v912 = vld [vmem:[#allocation6 + $0x1f8] sm:$0xf]
    %v913 = vld [vmem:[#allocation6 + $0x1fc] sm:$0xf]
    %v914 = vld [vmem:[#allocation7] sm:$0x1]
    %v916 = vlaneseq
    %v917 = vshrl.u32 %v916, 7
    %v918 = vsub.s32 0, %v917
    %v919 = vrot.slane %v914, %v918
    %v1049 = vunpack.c.l.b16 %v786
    %v1050 = vunpack.c.l.b16 %v787
    %v1051 = vunpack.c.l.b16 %v788
    %v1052 = vunpack.c.l.b16 %v789
    %v1053 = vunpack.c.l.b16 %v790
    %v1054 = vunpack.c.l.b16 %v791
    %v1055 = vunpack.c.l.b16 %v792
    %v1056 = vunpack.c.l.b16 %v793
    %v1057 = vunpack.c.l.b16 %v794
    %v1058 = vunpack.c.l.b16 %v795
    %v1059 = vunpack.c.l.b16 %v796
    %v1060 = vunpack.c.l.b16 %v797
    %v1061 = vunpack.c.l.b16 %v798
    %v1062 = vunpack.c.l.b16 %v799
    %v1063 = vunpack.c.l.b16 %v800
    %v1064 = vunpack.c.l.b16 %v801
    %v1065 = vunpack.c.l.b16 %v802
    %v1066 = vunpack.c.l.b16 %v803
    %v1067 = vunpack.c.l.b16 %v804
    %v1068 = vunpack.c.l.b16 %v805
    %v1069 = vunpack.c.l.b16 %v806
    %v1070 = vunpack.c.l.b16 %v807
    %v1071 = vunpack.c.l.b16 %v808
    %v1072 = vunpack.c.l.b16 %v809
    %v1073 = vunpack.c.l.b16 %v810
    %v1074 = vunpack.c.l.b16 %v811
    %v1075 = vunpack.c.l.b16 %v812
    %v1076 = vunpack.c.l.b16 %v813
    %v1077 = vunpack.c.l.b16 %v814
    %v1078 = vunpack.c.l.b16 %v815
    %v1079 = vunpack.c.l.b16 %v816
    %v1080 = vunpack.c.l.b16 %v817
    %v1081 = vunpack.c.l.b16 %v818
    %v1082 = vunpack.c.l.b16 %v819
    %v1083 = vunpack.c.l.b16 %v820
    %v1084 = vunpack.c.l.b16 %v821
    %v1085 = vunpack.c.l.b16 %v822
    %v1086 = vunpack.c.l.b16 %v823
    %v1087 = vunpack.c.l.b16 %v824
    %v1088 = vunpack.c.l.b16 %v825
    %v1089 = vunpack.c.l.b16 %v826
    %v1090 = vunpack.c.l.b16 %v827
    %v1091 = vunpack.c.l.b16 %v828
    %v1092 = vunpack.c.l.b16 %v829
    %v1093 = vunpack.c.l.b16 %v830
    %v1094 = vunpack.c.l.b16 %v831
    %v1095 = vunpack.c.l.b16 %v832
    %v1096 = vunpack.c.l.b16 %v833
    %v1097 = vunpack.c.l.b16 %v834
    %v1098 = vunpack.c.l.b16 %v835
    %v1099 = vunpack.c.l.b16 %v836
    %v1100 = vunpack.c.l.b16 %v837
    %v1101 = vunpack.c.l.b16 %v838
    %v1102 = vunpack.c.l.b16 %v839
    %v1103 = vunpack.c.l.b16 %v840
    %v1104 = vunpack.c.l.b16 %v841
    %v1105 = vunpack.c.l.b16 %v842
    %v1106 = vunpack.c.l.b16 %v843
    %v1107 = vunpack.c.l.b16 %v844
    %v1108 = vunpack.c.l.b16 %v845
    %v1109 = vunpack.c.l.b16 %v846
    %v1110 = vunpack.c.l.b16 %v847
    %v1111 = vunpack.c.l.b16 %v848
    %v1112 = vunpack.c.l.b16 %v849
    %v1113 = vunpack.c.l.b16 %v850
    %v1114 = vunpack.c.l.b16 %v851
    %v1115 = vunpack.c.l.b16 %v852
    %v1116 = vunpack.c.l.b16 %v853
    %v1117 = vunpack.c.l.b16 %v854
    %v1118 = vunpack.c.l.b16 %v855
    %v1119 = vunpack.c.l.b16 %v856
    %v1120 = vunpack.c.l.b16 %v857
    %v1121 = vunpack.c.l.b16 %v858
    %v1122 = vunpack.c.l.b16 %v859
    %v1123 = vunpack.c.l.b16 %v860
    %v1124 = vunpack.c.l.b16 %v861
    %v1125 = vunpack.c.l.b16 %v862
    %v1126 = vunpack.c.l.b16 %v863
    %v1127 = vunpack.c.l.b16 %v864
    %v1128 = vunpack.c.l.b16 %v865
    %v1129 = vunpack.c.l.b16 %v866
    %v1130 = vunpack.c.l.b16 %v867
    %v1131 = vunpack.c.l.b16 %v868
    %v1132 = vunpack.c.l.b16 %v869
    %v1133 = vunpack.c.l.b16 %v870
    %v1134 = vunpack.c.l.b16 %v871
    %v1135 = vunpack.c.l.b16 %v872
    %v1136 = vunpack.c.l.b16 %v873
    %v1137 = vunpack.c.l.b16 %v874
    %v1138 = vunpack.c.l.b16 %v875
    %v1139 = vunpack.c.l.b16 %v876
    %v1140 = vunpack.c.l.b16 %v877
    %v1141 = vunpack.c.l.b16 %v878
    %v1142 = vunpack.c.l.b16 %v879
    %v1143 = vunpack.c.l.b16 %v880
    %v1144 = vunpack.c.l.b16 %v881
    %v1145 = vunpack.c.l.b16 %v882
    %v1146 = vunpack.c.l.b16 %v883
    %v1147 = vunpack.c.l.b16 %v884
    %v1148 = vunpack.c.l.b16 %v885
    %v1149 = vunpack.c.l.b16 %v886
    %v1150 = vunpack.c.l.b16 %v887
    %v1151 = vunpack.c.l.b16 %v888
    %v1152 = vunpack.c.l.b16 %v889
    %v1153 = vunpack.c.l.b16 %v890
    %v1154 = vunpack.c.l.b16 %v891
    %v1155 = vunpack.c.l.b16 %v892
    %v1156 = vunpack.c.l.b16 %v893
    %v1157 = vunpack.c.l.b16 %v894
    %v1158 = vunpack.c.l.b16 %v895
    %v1159 = vunpack.c.l.b16 %v896
    %v1160 = vunpack.c.l.b16 %v897
    %v1161 = vunpack.c.l.b16 %v898
    %v1162 = vunpack.c.l.b16 %v899
    %v1163 = vunpack.c.l.b16 %v900
    %v1164 = vunpack.c.l.b16 %v901
    %v1165 = vunpack.c.l.b16 %v902
    %v1166 = vunpack.c.l.b16 %v903
    %v1167 = vunpack.c.l.b16 %v904
    %v1168 = vunpack.c.l.b16 %v905
    %v1169 = vunpack.c.l.b16 %v906
    %v1170 = vunpack.c.l.b16 %v907
    %v1171 = vunpack.c.l.b16 %v908
    %v1172 = vunpack.c.l.b16 %v909
    %v1173 = vunpack.c.l.b16 %v910
    %v1174 = vunpack.c.l.b16 %v911
    %v1175 = vunpack.c.l.b16 %v912
    %v1176 = vunpack.c.l.b16 %v913
    %v1177 = vpack.c.b16 %v1050, %v1049
    %v1178 = vpack.c.b16 %v1052, %v1051
    %v1179 = vpack.c.b16 %v1054, %v1053
    %v1180 = vpack.c.b16 %v1056, %v1055
    %v1181 = vpack.c.b16 %v1058, %v1057
    %v1182 = vpack.c.b16 %v1060, %v1059
    %v1183 = vpack.c.b16 %v1062, %v1061
    %v1184 = vpack.c.b16 %v1064, %v1063
    %v1185 = vpack.c.b16 %v1066, %v1065
    %v1186 = vpack.c.b16 %v1068, %v1067
    %v1187 = vpack.c.b16 %v1070, %v1069
    %v1188 = vpack.c.b16 %v1072, %v1071
    %v1189 = vpack.c.b16 %v1074, %v1073
    %v1190 = vpack.c.b16 %v1076, %v1075
    %v1191 = vpack.c.b16 %v1078, %v1077
    %v1192 = vpack.c.b16 %v1080, %v1079
    %v1193 = vpack.c.b16 %v1082, %v1081
    %v1194 = vpack.c.b16 %v1084, %v1083
    %v1195 = vpack.c.b16 %v1086, %v1085
    %v1196 = vpack.c.b16 %v1088, %v1087
    %v1197 = vpack.c.b16 %v1090, %v1089
    %v1198 = vpack.c.b16 %v1092, %v1091
    %v1199 = vpack.c.b16 %v1094, %v1093
    %v1200 = vpack.c.b16 %v1096, %v1095
    %v1201 = vpack.c.b16 %v1098, %v1097
    %v1202 = vpack.c.b16 %v1100, %v1099
    %v1203 = vpack.c.b16 %v1102, %v1101
    %v1204 = vpack.c.b16 %v1104, %v1103
    %v1205 = vpack.c.b16 %v1106, %v1105
    %v1206 = vpack.c.b16 %v1108, %v1107
    %v1207 = vpack.c.b16 %v1110, %v1109
    %v1208 = vpack.c.b16 %v1112, %v1111
    %v1209 = vpack.c.b16 %v1114, %v1113
    %v1210 = vpack.c.b16 %v1116, %v1115
    %v1211 = vpack.c.b16 %v1118, %v1117
    %v1212 = vpack.c.b16 %v1120, %v1119
    %v1213 = vpack.c.b16 %v1122, %v1121
    %v1214 = vpack.c.b16 %v1124, %v1123
    %v1215 = vpack.c.b16 %v1126, %v1125
    %v1216 = vpack.c.b16 %v1128, %v1127
    %v1217 = vpack.c.b16 %v1130, %v1129
    %v1218 = vpack.c.b16 %v1132, %v1131
    %v1219 = vpack.c.b16 %v1134, %v1133
    %v1220 = vpack.c.b16 %v1136, %v1135
    %v1221 = vpack.c.b16 %v1138, %v1137
    %v1222 = vpack.c.b16 %v1140, %v1139
    %v1223 = vpack.c.b16 %v1142, %v1141
    %v1224 = vpack.c.b16 %v1144, %v1143
    %v1225 = vpack.c.b16 %v1146, %v1145
    %v1226 = vpack.c.b16 %v1148, %v1147
    %v1227 = vpack.c.b16 %v1150, %v1149
    %v1228 = vpack.c.b16 %v1152, %v1151
    %v1229 = vpack.c.b16 %v1154, %v1153
    %v1230 = vpack.c.b16 %v1156, %v1155
    %v1231 = vpack.c.b16 %v1158, %v1157
    %v1232 = vpack.c.b16 %v1160, %v1159
    %v1233 = vpack.c.b16 %v1162, %v1161
    %v1234 = vpack.c.b16 %v1164, %v1163
    %v1235 = vpack.c.b16 %v1166, %v1165
    %v1236 = vpack.c.b16 %v1168, %v1167
    %v1237 = vpack.c.b16 %v1170, %v1169
    %v1238 = vpack.c.b16 %v1172, %v1171
    %v1239 = vpack.c.b16 %v1174, %v1173
    %v1240 = vpack.c.b16 %v1176, %v1175
    %1305 = vmatprep.subr.bf16.mxu0 0
    %1306 = vmatpush1.bf16.msra.mxu0 %v1184
    %1307 = vmatprep.subr.bf16.mxu0 0
    %1308 = vmatpush1.bf16.msra.mxu0 %v1183
    %1309 = vmatprep.subr.bf16.mxu0 0
    %1310 = vmatpush1.bf16.msra.mxu0 %v1182
    %1311 = vmatprep.subr.bf16.mxu0 0
    %1312 = vmatpush1.bf16.msra.mxu0 %v1181
    %1313 = vmatprep.subr.bf16.mxu0 0
    %1314 = vmatpush1.bf16.msra.mxu0 %v1180
    %1315 = vmatprep.subr.bf16.mxu0 0
    %1316 = vmatpush1.bf16.msra.mxu0 %v1179
    %1317 = vmatprep.subr.bf16.mxu0 0
    %1318 = vmatpush1.bf16.msra.mxu0 %v1178
    %1319 = vmatprep.subr.bf16.mxu0 0
    %1320 = vmatpush1.bf16.msra.mxu0 %v1177
    %1321 = vmatprep.subr.bf16.mxu0 0
    %1322 = vmatpush2.bf16.msra.mxu0 %v1192
    %1323 = vmatprep.subr.bf16.mxu0 0
    %1324 = vmatpush2.bf16.msra.mxu0 %v1191
    %1325 = vmatprep.subr.bf16.mxu0 0
    %1326 = vmatpush2.bf16.msra.mxu0 %v1190
    %1327 = vmatprep.subr.bf16.mxu0 0
    %1328 = vmatpush2.bf16.msra.mxu0 %v1189
    %1329 = vmatprep.subr.bf16.mxu0 0
    %1330 = vmatpush2.bf16.msra.mxu0 %v1188
    %1331 = vmatprep.subr.bf16.mxu0 0
    %1332 = vmatpush2.bf16.msra.mxu0 %v1187
    %1333 = vmatprep.subr.bf16.mxu0 0
    %1334 = vmatpush2.bf16.msra.mxu0 %v1186
    %1335 = vmatprep.subr.bf16.mxu0 0
    %1336 = vmatpush2.bf16.msra.mxu0 %v1185
    %1337 = vmatprep.mubr.bf16.mxu0 %v227
    %1338 = vmatmul.mubr.bf16.gmra.mxu0 %v226
    %v1339 = vpop.f32.mrf.mxu0
    %v1340 = vadd.f32 %v919, %v1339
    %v1341 = vpop.f32.mrf.mxu0
    %v1342 = vpop.f32.mrf.mxu0
    %v1343 = vpop.f32.mrf.mxu0
    %1344 = vdwg.mxu0
    %1345 = vmatprep.subr.bf16.mxu0 0
    %1346 = vmatpush1.bf16.msra.mxu0 %v1200
    %1347 = vmatprep.subr.bf16.mxu0 0
    %1348 = vmatpush1.bf16.msra.mxu0 %v1199
    %1349 = vmatprep.subr.bf16.mxu0 0
    %1350 = vmatpush1.bf16.msra.mxu0 %v1198
    %1351 = vmatprep.subr.bf16.mxu0 0
    %1352 = vmatpush1.bf16.msra.mxu0 %v1197
    %1353 = vmatprep.subr.bf16.mxu0 0
    %1354 = vmatpush1.bf16.msra.mxu0 %v1196
    %1355 = vmatprep.subr.bf16.mxu0 0
    %1356 = vmatpush1.bf16.msra.mxu0 %v1195
    %1357 = vmatprep.subr.bf16.mxu0 0
    %1358 = vmatpush1.bf16.msra.mxu0 %v1194
    %1359 = vmatprep.subr.bf16.mxu0 0
    %1360 = vmatpush1.bf16.msra.mxu0 %v1193
    %1361 = vmatprep.subr.bf16.mxu0 0
    %1362 = vmatpush2.bf16.msra.mxu0 %v1208
    %1363 = vmatprep.subr.bf16.mxu0 0
    %1364 = vmatpush2.bf16.msra.mxu0 %v1207
    %1365 = vmatprep.subr.bf16.mxu0 0
    %1366 = vmatpush2.bf16.msra.mxu0 %v1206
    %1367 = vmatprep.subr.bf16.mxu0 0
    %1368 = vmatpush2.bf16.msra.mxu0 %v1205
    %1369 = vmatprep.subr.bf16.mxu0 0
    %1370 = vmatpush2.bf16.msra.mxu0 %v1204
    %1371 = vmatprep.subr.bf16.mxu0 0
    %1372 = vmatpush2.bf16.msra.mxu0 %v1203
    %1373 = vmatprep.subr.bf16.mxu0 0
    %1374 = vmatpush2.bf16.msra.mxu0 %v1202
    %1375 = vmatprep.subr.bf16.mxu0 0
    %1376 = vmatpush2.bf16.msra.mxu0 %v1201
    %1377 = vmatprep.mubr.bf16.mxu0 %v229
    %1378 = vmatmul.mubr.bf16.gmra.mxu0 %v228
    %v1379 = vpop.f32.mrf.mxu0
    %v1380 = vadd.f32 %v1340, %v1379
    %v1381 = vpop.f32.mrf.mxu0
    %v1382 = vpop.f32.mrf.mxu0
    %v1383 = vpop.f32.mrf.mxu0
    %1384 = vdwg.mxu0
    %1385 = vmatprep.subr.bf16.mxu0 0
    %1386 = vmatpush1.bf16.msra.mxu0 %v1216
    %1387 = vmatprep.subr.bf16.mxu0 0
    %1388 = vmatpush1.bf16.msra.mxu0 %v1215
    %1389 = vmatprep.subr.bf16.mxu0 0
    %1390 = vmatpush1.bf16.msra.mxu0 %v1214
    %1391 = vmatprep.subr.bf16.mxu0 0
    %1392 = vmatpush1.bf16.msra.mxu0 %v1213
    %1393 = vmatprep.subr.bf16.mxu0 0
    %1394 = vmatpush1.bf16.msra.mxu0 %v1212
    %1395 = vmatprep.subr.bf16.mxu0 0
    %1396 = vmatpush1.bf16.msra.mxu0 %v1211
    %1397 = vmatprep.subr.bf16.mxu0 0
    %1398 = vmatpush1.bf16.msra.mxu0 %v1210
    %1399 = vmatprep.subr.bf16.mxu0 0
    %1400 = vmatpush1.bf16.msra.mxu0 %v1209
    %1401 = vmatprep.subr.bf16.mxu0 0
    %1402 = vmatpush2.bf16.msra.mxu0 %v1224
    %1403 = vmatprep.subr.bf16.mxu0 0
    %1404 = vmatpush2.bf16.msra.mxu0 %v1223
    %1405 = vmatprep.subr.bf16.mxu0 0
    %1406 = vmatpush2.bf16.msra.mxu0 %v1222
    %1407 = vmatprep.subr.bf16.mxu0 0
    %1408 = vmatpush2.bf16.msra.mxu0 %v1221
    %1409 = vmatprep.subr.bf16.mxu0 0
    %1410 = vmatpush2.bf16.msra.mxu0 %v1220
    %1411 = vmatprep.subr.bf16.mxu0 0
    %1412 = vmatpush2.bf16.msra.mxu0 %v1219
    %1413 = vmatprep.subr.bf16.mxu0 0
    %1414 = vmatpush2.bf16.msra.mxu0 %v1218
    %1415 = vmatprep.subr.bf16.mxu0 0
    %1416 = vmatpush2.bf16.msra.mxu0 %v1217
    %1417 = vmatprep.mubr.bf16.mxu0 %v231
    %1418 = vmatmul.mubr.bf16.gmra.mxu0 %v230
    %v1419 = vpop.f32.mrf.mxu0
    %v1420 = vadd.f32 %v1380, %v1419
    %v1421 = vpop.f32.mrf.mxu0
    %v1422 = vpop.f32.mrf.mxu0
    %v1423 = vpop.f32.mrf.mxu0
    %1424 = vdwg.mxu0
    %1425 = vmatprep.subr.bf16.mxu0 0
    %1426 = vmatpush1.bf16.msra.mxu0 %v1232
    %1427 = vmatprep.subr.bf16.mxu0 0
    %1428 = vmatpush1.bf16.msra.mxu0 %v1231
    %1429 = vmatprep.subr.bf16.mxu0 0
    %1430 = vmatpush1.bf16.msra.mxu0 %v1230
    %1431 = vmatprep.subr.bf16.mxu0 0
    %1432 = vmatpush1.bf16.msra.mxu0 %v1229
    %1433 = vmatprep.subr.bf16.mxu0 0
    %1434 = vmatpush1.bf16.msra.mxu0 %v1228
    %1435 = vmatprep.subr.bf16.mxu0 0
    %1436 = vmatpush1.bf16.msra.mxu0 %v1227
    %1437 = vmatprep.subr.bf16.mxu0 0
    %1438 = vmatpush1.bf16.msra.mxu0 %v1226
    %1439 = vmatprep.subr.bf16.mxu0 0
    %1440 = vmatpush1.bf16.msra.mxu0 %v1225
    %1441 = vmatprep.subr.bf16.mxu0 0
    %1442 = vmatpush2.bf16.msra.mxu0 %v1240
    %1443 = vmatprep.subr.bf16.mxu0 0
    %1444 = vmatpush2.bf16.msra.mxu0 %v1239
    %1445 = vmatprep.subr.bf16.mxu0 0
    %1446 = vmatpush2.bf16.msra.mxu0 %v1238
    %1447 = vmatprep.subr.bf16.mxu0 0
    %1448 = vmatpush2.bf16.msra.mxu0 %v1237
    %1449 = vmatprep.subr.bf16.mxu0 0
    %1450 = vmatpush2.bf16.msra.mxu0 %v1236
    %1451 = vmatprep.subr.bf16.mxu0 0
    %1452 = vmatpush2.bf16.msra.mxu0 %v1235
    %1453 = vmatprep.subr.bf16.mxu0 0
    %1454 = vmatpush2.bf16.msra.mxu0 %v1234
    %1455 = vmatprep.subr.bf16.mxu0 0
    %1456 = vmatpush2.bf16.msra.mxu0 %v1233
    %1457 = vmatprep.mubr.bf16.mxu0 %v233
    %1458 = vmatmul.mubr.bf16.gmra.mxu0 %v232
    %v1459 = vpop.f32.mrf.mxu0
    %v1460 = vadd.f32 %v1420, %v1459
    %v1461 = vpop.f32.mrf.mxu0
    %v1462 = vpop.f32.mrf.mxu0
    %v1463 = vpop.f32.mrf.mxu0
    %1464 = vdwg.mxu0
    %v1465 = vlaneseq
    %v1466 = vshrl.u32 %v1465, 7
    %v1467 = vadd.s32 %v1466, 8
    %v1468 = vadd.s32 %v1466, 16
    %v1469 = vadd.s32 %v1466, 24
    %v1470 = vlaneseq
    %v1471 = vand.u32 %v1470, 127
    %v1472 = vadd.s32 %v1466, 64
    %v1473 = vadd.s32 %v1467, 64
    %v1474 = vadd.s32 %v1468, 64
    %v1475 = vadd.s32 %v1469, 64
    %vm1476 = vcmp.eq.s32.totalorder %v1471, %v1472
    %vm1477 = vcmp.eq.s32.totalorder %v1471, %v1473
    %vm1478 = vcmp.eq.s32.totalorder %v1471, %v1474
    %vm1479 = vcmp.eq.s32.totalorder %v1471, %v1475
    %v1480 = vsel %vm1476, 1, 0
    %v1481 = vsel %vm1477, 1, 0
    %v1482 = vsel %vm1478, 1, 0
    %v1483 = vsel %vm1479, 1, 0
    %v1484 = vcvt.s32.f32 %v1480
    %v1485 = vcvt.s32.f32 %v1481
    %v1486 = vcvt.s32.f32 %v1482
    %v1487 = vcvt.s32.f32 %v1483
    %v1488 = vld [vmem:[%s5] sm:$0xff]
    %vm1489 = vcmask 261120
    %v1491 = vsel %vm1489, %v1488, 0
    %1493 = vmatprep.subr.mxu0 0.0
    %1494 = vmatpush1.msra.mxu0 0.0
    %1495 = vmatprep.subr.mxu0 0.0
    %1496 = vmatpush1.msra.mxu0 0.0
    %1497 = vmatprep.subr.mxu0 0.0
    %1498 = vmatpush1.msra.mxu0 0.0
    %1499 = vmatprep.subr.mxu0 0.0
    %1500 = vmatpush1.msra.mxu0 0.0
    %1501 = vmatprep.subr.mxu0 0.0
    %1502 = vmatpush1.msra.mxu0 0.0
    %1503 = vmatprep.subr.mxu0 0.0
    %1504 = vmatpush1.msra.mxu0 0.0
    %1505 = vmatprep.subr.mxu0 0.0
    %1506 = vmatpush1.msra.mxu0 0.0
    %1507 = vmatprep.subr.mxu0 0.0
    %1508 = vmatpush1.msra.mxu0 0.0
    %1509 = vmatprep.subr.mxu0 0.0
    %1510 = vmatpush1.msra.mxu0 0.0
    %1511 = vmatprep.subr.mxu0 0.0
    %1512 = vmatpush1.msra.mxu0 0.0
    %1513 = vmatprep.subr.mxu0 0.0
    %1514 = vmatpush1.msra.mxu0 0.0
    %1515 = vmatprep.subr.mxu0 0.0
    %1516 = vmatpush1.msra.mxu0 0.0
    %1517 = vmatprep.subr.mxu0 0.0
    %1518 = vmatpush1.msra.mxu0 %v1487
    %1519 = vmatprep.subr.mxu0 0.0
    %1520 = vmatpush1.msra.mxu0 %v1486
    %1521 = vmatprep.subr.mxu0 0.0
    %1522 = vmatpush1.msra.mxu0 %v1485
    %1523 = vmatprep.subr.mxu0 0.0
    %1524 = vmatpush1.msra.mxu0 %v1484
    %1525 = vmatprep.subr.mxu0 0.0
    %1526 = vmatpush2.msra.mxu0 0.0
    %1527 = vmatprep.subr.mxu0 0.0
    %1528 = vmatpush2.msra.mxu0 0.0
    %1529 = vmatprep.subr.mxu0 0.0
    %1530 = vmatpush2.msra.mxu0 0.0
    %1531 = vmatprep.subr.mxu0 0.0
    %1532 = vmatpush2.msra.mxu0 0.0
    %1533 = vmatprep.subr.mxu0 0.0
    %1534 = vmatpush2.msra.mxu0 0.0
    %1535 = vmatprep.subr.mxu0 0.0
    %1536 = vmatpush2.msra.mxu0 0.0
    %1537 = vmatprep.subr.mxu0 0.0
    %1538 = vmatpush2.msra.mxu0 0.0
    %1539 = vmatprep.subr.mxu0 0.0
    %1540 = vmatpush2.msra.mxu0 0.0
    %1541 = vmatprep.subr.mxu0 0.0
    %1542 = vmatpush2.msra.mxu0 0.0
    %1543 = vmatprep.subr.mxu0 0.0
    %1544 = vmatpush2.msra.mxu0 0.0
    %1545 = vmatprep.subr.mxu0 0.0
    %1546 = vmatpush2.msra.mxu0 0.0
    %1547 = vmatprep.subr.mxu0 0.0
    %1548 = vmatpush2.msra.mxu0 0.0
    %1549 = vmatprep.subr.mxu0 0.0
    %1550 = vmatpush2.msra.mxu0 0.0
    %1551 = vmatprep.subr.mxu0 0.0
    %1552 = vmatpush2.msra.mxu0 0.0
    %1553 = vmatprep.subr.mxu0 0.0
    %1554 = vmatpush2.msra.mxu0 0.0
    %1555 = vmatprep.subr.mxu0 0.0
    %1556 = vmatpush2.msra.mxu0 0.0
    %1557 = vmatprep.mubr.f32.mxu0 0.0
    %1558 = vmatmul.mubr.f32.gmra.mxu0 %v1491
    %v1559 = vpop.f32.mrf.mxu0
    %v1560 = vadd.f32 0.0, %v1559
    %v1561 = vpop.f32.mrf.mxu0
    %1562 = vdwg.mxu0
    %v1563 = vmul.f32 %v1460, 0.5
    %v1564 = vmul.f32 %v1563, 1.442695
    %v1565 = vpow.pop %v1564
    %v1566 = vmul.f32 %v1565, %v1560
    %v1567 = vadd.f32 %v781, %v1566
    %1568 = vst [vmem:[%s6] sm:$0xff] %v1567
    // Predicated region
    $region42: #{ga_forward.1} parent=1 // pred_check
      _
    $region43: #{ga_forward.1} parent=1 // pred_check_branch
      %1570 = sbr.rel (0) target = $region45
    $region44: #{ga_forward.1} parent=1 // pred_region
      _
    $region45: #{ga_forward.1} parent=1 // pred_fallthru
      _
    // Predicated region
    $region46: #{ga_forward.1} parent=1 // pred_check
      _
    $region47: #{ga_forward.1} parent=1 // pred_check_branch
      %1572 = sbr.rel (0) target = $region49
    $region48: #{ga_forward.1} parent=1 // pred_region
      _
    $region49: #{ga_forward.1} parent=1 // pred_fallthru
      _
    %1573 = vsyncpa [#allocation3], 1
    %1574 = vsyncpa [#allocation5], 1
    %1575 = vsyncpa [#allocation8], 1

</llo_original>
